<compile_context>
chip_gen: v6e
topology: v6e:2x2x1
jax: 0.10.0
libtpu: 0.0.40
codegen_flags: <defaults>
</compile_context>

<pallas_src>
import functools

import jax
import jax.numpy as jnp
from jax import lax
from jax.experimental import pallas as pl
from jax.experimental.pallas import tpu as pltpu


def value_net_kernel(x_ref, w1_ref, b1_ref, w2_ref, b2_ref, wv_ref, bv_ref, o_ref):
    # Hoist small-operand reads once per grid step.
    b1 = b1_ref[...]            # (1, FC1) f32
    b2 = b2_ref[...]            # (1, FC2) f32
    wv = wv_ref[...]            # (1, FC2) f32 (value head stored as a row)
    bv = bv_ref[...]            # (1, 1)   f32

    # In-kernel f32 -> bf16 cast (VPU slots are free here; saves wrapper pass).
    x = x_ref[...].astype(jnp.bfloat16)          # (tile_b, D)

    # fc1 + relu: bf16 MXU matmul, f32 accumulation, f32 bias/relu.
    h = jnp.dot(x, w1_ref[...], preferred_element_type=jnp.float32)
    h = jnp.maximum(h + b1, 0.0)                 # (tile_b, FC1) f32

    # fc2 + relu.
    h = jnp.dot(h.astype(jnp.bfloat16), w2_ref[...],
                preferred_element_type=jnp.float32)
    h = jnp.maximum(h + b2, 0.0)                 # (tile_b, FC2) f32

    # value head (fc2 -> 1), computed as wv (1,FC2) contracted against h's
    # last dim -> (1, tile_b): the result is lane-dense, so the store is a
    # full-width vst instead of tile_b/8 masked partial stores.
    v = lax.dot_general(wv, h,
                        dimension_numbers=(((1,), (1,)), ((), ())),
                        preferred_element_type=jnp.float32)   # (1, tile_b)
    o_ref[...] = (v + bv).astype(o_ref.dtype)


@functools.partial(jax.jit, static_argnames=("tile_b",))
def value_network_forward(state, params, *, tile_b=None):
    """Fused 3-layer MLP forward.  state: (B, D) float32 -> (B, 1) float32."""
    w1, b1, w2, b2, wv, bv = params
    B, D = state.shape
    FC1 = w1.shape[1]
    FC2 = w2.shape[1]

    # Batch-tile heuristic:
    #   * B <= 256: one full-batch tile (rounded up to the 8-row sublane).
    #   * otherwise: start from 2048 (amortizes the ~0.35us/step overhead,
    #     stays well inside v7x's 64 MiB VMEM) and halve until the grid has at
    #     least 2 steps so v7x's two TensorCores both receive work; the tile
    #     stays a multiple of 128 so the (1, tile_b) output block is lane-legal.
    if tile_b is None:
        if B <= 256:
            tile_b = ((B + 7) // 8) * 8
        else:
            tile_b = 2048
            while tile_b > 256 and pl.cdiv(B, tile_b) < 2:
                tile_b //= 2

    # Pad the batch only when needed; padded rows compute garbage that is
    # sliced off below.
    n_blocks = pl.cdiv(B, tile_b)
    B_pad = n_blocks * tile_b
    x = state
    if B_pad != B:
        x = jnp.pad(x, ((0, B_pad - B), (0, 0)))

    out = pl.pallas_call(
        value_net_kernel,
        out_shape=jax.ShapeDtypeStruct((1, B_pad), jnp.float32),
        grid=(n_blocks,),
        in_specs=[
            pl.BlockSpec((tile_b, D), lambda i: (i, 0)),   # state tile (f32)
            pl.BlockSpec((D, FC1),    lambda i: (0, 0)),   # w1 (bf16, resident)
            pl.BlockSpec((1, FC1),    lambda i: (0, 0)),   # b1
            pl.BlockSpec((FC1, FC2),  lambda i: (0, 0)),   # w2 (bf16, resident)
            pl.BlockSpec((1, FC2),    lambda i: (0, 0)),   # b2
            pl.BlockSpec((1, FC2),    lambda i: (0, 0)),   # wv row
            pl.BlockSpec((1, 1),      lambda i: (0, 0)),   # bv
        ],
        out_specs=pl.BlockSpec((1, tile_b), lambda i: (0, i)),   # lane-dense
        compiler_params=pltpu.CompilerParams(
            dimension_semantics=("parallel",),
            vmem_limit_bytes=48 * 1024 * 1024),
    )(x, w1, b1, w2, b2, wv, bv)

    # (1, B_pad) row -> (B, 1) column, dropping padded rows.
    return out[:, :B].T


def init_params(key, input_dim, fc1_dims=256, fc2_dims=256):
    """Init mirroring PyTorch Linear default (uniform +-1/sqrt(fan_in)).

    w1/w2 are stored as (in, out) in bf16 (MXU dtype); the value head is a
    (1, fc2) f32 row; biases are (1, out) f32.
    """
    ks = jax.random.split(key, 6)

    def uni(k, shape, fan_in):
        bound = 1.0 / jnp.sqrt(jnp.float32(fan_in))
        return jax.random.uniform(k, shape, jnp.float32, -bound, bound)

    w1 = uni(ks[0], (input_dim, fc1_dims), input_dim).astype(jnp.bfloat16)
    b1 = uni(ks[1], (1, fc1_dims), input_dim)
    w2 = uni(ks[2], (fc1_dims, fc2_dims), fc1_dims).astype(jnp.bfloat16)
    b2 = uni(ks[3], (1, fc2_dims), fc1_dims)
    wv = uni(ks[4], (1, fc2_dims), fc2_dims)    # value head as a row
    bv = uni(ks[5], (1, 1), fc2_dims)
    return (w1, b1, w2, b2, wv, bv)


if __name__ == "__main__":
    key = jax.random.PRNGKey(0)
    k_state, k_params = jax.random.split(key)

    # Small, forward-consistent shapes: batch=8 states of dim 16.
    batch, input_dim = 8, 16
    fc1_dims, fc2_dims = 256, 256

    state = jax.random.normal(k_state, (batch, input_dim), dtype=jnp.float32)
    params = init_params(k_params, input_dim, fc1_dims, fc2_dims)

    v = value_network_forward(state, params)
    v = jax.block_until_ready(v)

    # Pure-JAX reference of the same math (same bf16 casts, f32 accumulation).
    w1, b1, w2, b2, wv, bv = params
    xb = state.astype(jnp.bfloat16)
    h = jnp.maximum(jnp.dot(xb, w1, preferred_element_type=jnp.float32) + b1, 0.0)
    h = jnp.maximum(jnp.dot(h.astype(jnp.bfloat16), w2,
                            preferred_element_type=jnp.float32) + b2, 0.0)
    v_ref = jnp.dot(h, wv.T) + bv

    assert v.shape == (batch, 1), v.shape
    assert jnp.allclose(v, v_ref, atol=1e-2, rtol=1e-2), (v, v_ref)

    # TODO(synk): checkpoint save/load and the Adam optimizer from the PyTorch
    # module are training/IO utilities, not part of the forward pass.
    print("KERNEL_OK")
</pallas_src>

<mosaic_0001>
module attributes {stable_mosaic.version = 11 : i64} {
  func.func @value_net_kernel(%arg0: i32, %arg1: memref<8x16xf32, #tpu.memory_space<vmem>>, %arg2: memref<16x256xbf16, #tpu.memory_space<vmem>>, %arg3: memref<1x256xf32, #tpu.memory_space<vmem>>, %arg4: memref<256x256xbf16, #tpu.memory_space<vmem>>, %arg5: memref<1x256xf32, #tpu.memory_space<vmem>>, %arg6: memref<1x256xf32, #tpu.memory_space<vmem>>, %arg7: memref<1x1xf32, #tpu.memory_space<vmem>>, %arg8: memref<1x8xf32, #tpu.memory_space<vmem>>) attributes {dimension_semantics = [#tpu.dimension_semantics<parallel>], iteration_bounds = array<i64: 1>, scalar_prefetch = 0 : i64, scratch_operands = 0 : i64, tpu.core_type = #tpu.core_type<tc>, window_params = [{transform_indices = @transform_0, window_bounds = array<i64: 8, 16>}, {pipeline_mode = #tpu.pipeline_mode<synchronous>, transform_indices = @transform_1, window_bounds = array<i64: 16, 256>}, {pipeline_mode = #tpu.pipeline_mode<synchronous>, transform_indices = @transform_2, window_bounds = array<i64: 1, 256>}, {pipeline_mode = #tpu.pipeline_mode<synchronous>, transform_indices = @transform_3, window_bounds = array<i64: 256, 256>}, {pipeline_mode = #tpu.pipeline_mode<synchronous>, transform_indices = @transform_4, window_bounds = array<i64: 1, 256>}, {pipeline_mode = #tpu.pipeline_mode<synchronous>, transform_indices = @transform_5, window_bounds = array<i64: 1, 256>}, {pipeline_mode = #tpu.pipeline_mode<synchronous>, transform_indices = @transform_6, window_bounds = array<i64: 1, 1>}, {transform_indices = @transform_7, window_bounds = array<i64: 1, 8>}]} {
    %c0 = arith.constant 0 : index
    %c0_0 = arith.constant 0 : index
    %0 = vector.load %arg3[%c0, %c0_0] : memref<1x256xf32, #tpu.memory_space<vmem>>, vector<1x256xf32>
    %c0_1 = arith.constant 0 : index
    %c0_2 = arith.constant 0 : index
    %1 = vector.load %arg5[%c0_1, %c0_2] : memref<1x256xf32, #tpu.memory_space<vmem>>, vector<1x256xf32>
    %c0_3 = arith.constant 0 : index
    %c0_4 = arith.constant 0 : index
    %2 = vector.load %arg6[%c0_3, %c0_4] : memref<1x256xf32, #tpu.memory_space<vmem>>, vector<1x256xf32>
    %c0_5 = arith.constant 0 : index
    %c0_6 = arith.constant 0 : index
    %3 = vector.load %arg7[%c0_5, %c0_6] : memref<1x1xf32, #tpu.memory_space<vmem>>, vector<1x1xf32>
    %c0_7 = arith.constant 0 : index
    %c0_8 = arith.constant 0 : index
    %4 = vector.load %arg1[%c0_7, %c0_8] : memref<8x16xf32, #tpu.memory_space<vmem>>, vector<8x16xf32>
    %5 = arith.truncf %4 : vector<8x16xf32> to vector<8x16xbf16>
    %c0_9 = arith.constant 0 : index
    %c0_10 = arith.constant 0 : index
    %6 = vector.load %arg2[%c0_9, %c0_10] : memref<16x256xbf16, #tpu.memory_space<vmem>>, vector<16x256xbf16>
    %cst = arith.constant dense<0.000000e+00> : vector<8x256xf32>
    %7 = tpu.matmul %5, %6, %cst {dimension_numbers = #tpu.dot_dimension_numbers<[1], [0], [0], [1], [0, 0, 1, 1], [], []>} : vector<8x16xbf16>, vector<16x256xbf16>, vector<8x256xf32> -> vector<8x256xf32>
    %8 = vector.broadcast %0 : vector<1x256xf32> to vector<8x256xf32>
    %9 = arith.addf %7, %8 : vector<8x256xf32>
    %cst_11 = arith.constant 0.000000e+00 : f32
    %10 = vector.broadcast %cst_11 : f32 to vector<8x256xf32>
    %11 = arith.maximumf %9, %10 : vector<8x256xf32>
    %12 = arith.truncf %11 : vector<8x256xf32> to vector<8x256xbf16>
    %c0_12 = arith.constant 0 : index
    %c0_13 = arith.constant 0 : index
    %13 = vector.load %arg4[%c0_12, %c0_13] : memref<256x256xbf16, #tpu.memory_space<vmem>>, vector<256x256xbf16>
    %cst_14 = arith.constant dense<0.000000e+00> : vector<8x256xf32>
    %14 = tpu.matmul %12, %13, %cst_14 {dimension_numbers = #tpu.dot_dimension_numbers<[1], [0], [0], [1], [0, 0, 1, 1], [], []>} : vector<8x256xbf16>, vector<256x256xbf16>, vector<8x256xf32> -> vector<8x256xf32>
    %15 = vector.broadcast %1 : vector<1x256xf32> to vector<8x256xf32>
    %16 = arith.addf %14, %15 : vector<8x256xf32>
    %cst_15 = arith.constant 0.000000e+00 : f32
    %17 = vector.broadcast %cst_15 : f32 to vector<8x256xf32>
    %18 = arith.maximumf %16, %17 : vector<8x256xf32>
    %cst_16 = arith.constant dense<0.000000e+00> : vector<1x8xf32>
    %19 = tpu.matmul %2, %18, %cst_16 {dimension_numbers = #tpu.dot_dimension_numbers<[1], [1], [0], [0], [0, 0, 1, 0], [], []>} : vector<1x256xf32>, vector<8x256xf32>, vector<1x8xf32> -> vector<1x8xf32>
    %20 = vector.broadcast %3 : vector<1x1xf32> to vector<1x8xf32>
    %21 = arith.addf %19, %20 : vector<1x8xf32>
    %c0_17 = arith.constant 0 : index
    %c0_18 = arith.constant 0 : index
    %22 = vector.load %arg8[%c0_17, %c0_18] : memref<1x8xf32, #tpu.memory_space<vmem>>, vector<1x8xf32>
    tpu.vector_store %arg8[%c0_17, %c0_18], %21 {strides = array<i32>} : memref<1x8xf32, #tpu.memory_space<vmem>>, vector<1x8xf32>,
    return
  }
  func.func @transform_0(%arg0: i32) -> (i32, i32) {
    %c0_i32 = arith.constant 0 : i32
    %c0_i32_0 = arith.constant 0 : i32
    return %arg0, %c0_i32 : i32, i32
  }
  func.func @transform_1(%arg0: i32) -> (i32, i32) {
    %c0_i32 = arith.constant 0 : i32
    %c0_i32_0 = arith.constant 0 : i32
    %c0_i32_1 = arith.constant 0 : i32
    return %c0_i32, %c0_i32_0 : i32, i32
  }
  func.func @transform_2(%arg0: i32) -> (i32, i32) {
    %c0_i32 = arith.constant 0 : i32
    %c0_i32_0 = arith.constant 0 : i32
    %c0_i32_1 = arith.constant 0 : i32
    return %c0_i32, %c0_i32_0 : i32, i32
  }
  func.func @transform_3(%arg0: i32) -> (i32, i32) {
    %c0_i32 = arith.constant 0 : i32
    %c0_i32_0 = arith.constant 0 : i32
    %c0_i32_1 = arith.constant 0 : i32
    return %c0_i32, %c0_i32_0 : i32, i32
  }
  func.func @transform_4(%arg0: i32) -> (i32, i32) {
    %c0_i32 = arith.constant 0 : i32
    %c0_i32_0 = arith.constant 0 : i32
    %c0_i32_1 = arith.constant 0 : i32
    return %c0_i32, %c0_i32_0 : i32, i32
  }
  func.func @transform_5(%arg0: i32) -> (i32, i32) {
    %c0_i32 = arith.constant 0 : i32
    %c0_i32_0 = arith.constant 0 : i32
    %c0_i32_1 = arith.constant 0 : i32
    return %c0_i32, %c0_i32_0 : i32, i32
  }
  func.func @transform_6(%arg0: i32) -> (i32, i32) {
    %c0_i32 = arith.constant 0 : i32
    %c0_i32_0 = arith.constant 0 : i32
    %c0_i32_1 = arith.constant 0 : i32
    return %c0_i32, %c0_i32_0 : i32, i32
  }
  func.func @transform_7(%arg0: i32) -> (i32, i32) {
    %c0_i32 = arith.constant 0 : i32
    %c0_i32_0 = arith.constant 0 : i32
    return %c0_i32, %arg0 : i32, i32
  }
}

</mosaic_0001>

<llo_original>
// kernel: value_network_forward.1
$region0: #{value_network_forward.1}
  #allocation0 [shape = 'u32[]', space=smem, size = 0x4, offset = 0x4, fixed_abs, tag = 'smem constant byte address 0x4 - core index']
  #allocation1 [shape = 'u32[144,128]{1,0:T(1,128)}', space=vmem, size = 0x12000, scoped, tag = 'internal scratch']
  #allocation2 [shape = 'f32[1,1]{1,0:T(1,128)S(1)}', space=vmem, size = 0x200, scoped, tag = 'scoped memory for value_network_forward.1']
  %s0 = inlined_call_operand.hbm [shape: f32[8,16], index: 0, kind: input, shape index: {}]
  %s1 = inlined_call_operand.hbm [shape: bf16[16,256], index: 1, kind: input, shape index: {}]
  %s2 = inlined_call_operand.vmem [shape: f32[1,256], index: 2, kind: input, shape index: {}]
  %s3 = inlined_call_operand.hbm [shape: bf16[256,256], index: 3, kind: input, shape index: {}]
  %s4 = inlined_call_operand.vmem [shape: f32[1,256], index: 4, kind: input, shape index: {}]
  %s5 = inlined_call_operand.vmem [shape: f32[1,256], index: 5, kind: input, shape index: {}]
  %s6 = inlined_call_operand.<no memory space> [shape: f32[1,1], index: 6, kind: input, shape index: {}]
  %s7 = inlined_call_operand.hbm [shape: f32[1,8], index: 7, kind: output, shape index: {}]
  %s8 = sld [smem:[#allocation0]]
  $region50: #{value_network_forward.1} parent=0
    _
  %s10 = ssub.s32 1, %s8
  %s11 = scalar_select 0, %s10, %s8
  %v12 = vstv %s6
  %13 = vst [vmem:[#allocation2] sm:$0x1] %v12
  $region1: #{value_network_forward.1} parent=0
    #allocation3 [shape = 'u8[4096]{0}', space=vmem, size = 0x1000, scoped, tag = 'input window, operand 0, single buffered']
    #allocation4 [shape = 's32[1]{0}', space=sflag, size = 0x4, scoped, tag = 'scoped memory for value_network_forward.1']
    #allocation5 [shape = 's32[1]{0}', space=sflag, size = 0x4, scoped, tag = 'scoped memory for value_network_forward.1']
    #allocation6 [shape = 'u8[8192]{0}', space=vmem, size = 0x2000, scoped, tag = 'input window, operand 1, single buffered']
    #allocation7 [shape = 's32[1]{0}', space=sflag, size = 0x4, scoped, tag = 'scoped memory for value_network_forward.1']
    #allocation8 [shape = 'u8[131072]{0}', space=vmem, size = 0x20000, scoped, tag = 'input window, operand 3, single buffered']
    #allocation9 [shape = 'u8[512]{0}', space=vmem, size = 0x400, scoped, tag = 'output window, operand 0, single buffered']
    %14 = vsyncpa [#allocation4], 0
    %15 = vsyncpa [#allocation7], 0
    %16 = vsyncpa [#allocation5], 0
    // Predicated region
    $region2: #{value_network_forward.1} parent=1 // pred_check
      _
    $region3: #{value_network_forward.1} parent=1 // pred_check_branch
      %18 = sbr.rel (0) target = $region5
    $region4: #{value_network_forward.1} parent=1 // pred_region
      %s20 = ssub.s32 128, 128
      %21 = vsyncadd [#allocation4], %s20
      %s23 = sshll.u32 [#allocation3], 4
      %s24 = int_to_ptr.vmem [resolvable:$true] %s23
      %26 = dma.hbm_to_vmem [thread:$0]  %s0, 128, %s24, [#allocation4]
    $region5: #{value_network_forward.1} parent=1 // pred_fallthru
      _
    // Predicated region
    $region6: #{value_network_forward.1} parent=1 // pred_check
      _
    $region7: #{value_network_forward.1} parent=1 // pred_check_branch
      %28 = sbr.rel (0) target = $region9
    $region8: #{value_network_forward.1} parent=1 // pred_region
      %s30 = ssub.s32 256, 256
      %31 = vsyncadd [#allocation7], %s30
      %s32 = sshll.u32 [#allocation6], 4
      %s33 = int_to_ptr.vmem [resolvable:$true] %s32
      %38 = dma.hbm_to_vmem [thread:$0]  %s1, 256, %s33, [#allocation7], 128, 128, 8
    $region9: #{value_network_forward.1} parent=1 // pred_fallthru
      _
    // Predicated region
    $region10: #{value_network_forward.1} parent=1 // pred_check
      _
    $region11: #{value_network_forward.1} parent=1 // pred_check_branch
      %40 = sbr.rel (0) target = $region13
    $region12: #{value_network_forward.1} parent=1 // pred_region
      _
    $region13: #{value_network_forward.1} parent=1 // pred_fallthru
      _
    // Predicated region
    $region14: #{value_network_forward.1} parent=1 // pred_check
      _
    $region15: #{value_network_forward.1} parent=1 // pred_check_branch
      %42 = sbr.rel (0) target = $region17
    $region16: #{value_network_forward.1} parent=1 // pred_region
      %s44 = ssub.s32 4096, 4096
      %45 = vsyncadd [#allocation7], %s44
      %s46 = sshll.u32 [#allocation8], 4
      %s47 = int_to_ptr.vmem [resolvable:$true] %s46
      %52 = dma.hbm_to_vmem [thread:$0]  %s3, 4096, %s47, [#allocation7], 128, 128, 8
    $region17: #{value_network_forward.1} parent=1 // pred_fallthru
      _
    // Predicated region
    $region18: #{value_network_forward.1} parent=1 // pred_check
      _
    $region19: #{value_network_forward.1} parent=1 // pred_check_branch
      %54 = sbr.rel (0) target = $region21
    $region20: #{value_network_forward.1} parent=1 // pred_region
      _
    $region21: #{value_network_forward.1} parent=1 // pred_fallthru
      _
    // Predicated region
    $region22: #{value_network_forward.1} parent=1 // pred_check
      _
    $region23: #{value_network_forward.1} parent=1 // pred_check_branch
      %56 = sbr.rel (0) target = $region25
    $region24: #{value_network_forward.1} parent=1 // pred_region
      _
    $region25: #{value_network_forward.1} parent=1 // pred_fallthru
      _
    // Predicated region
    $region26: #{value_network_forward.1} parent=1 // pred_check
      _
    $region27: #{value_network_forward.1} parent=1 // pred_check_branch
      %58 = sbr.rel (0) target = $region29
    $region28: #{value_network_forward.1} parent=1 // pred_region
      _
    $region29: #{value_network_forward.1} parent=1 // pred_fallthru
      _
    // Predicated region
    $region30: #{value_network_forward.1} parent=1 // pred_check
      _
    $region31: #{value_network_forward.1} parent=1 // pred_check_branch
      %60 = sbr.rel (0) target = $region33
    $region32: #{value_network_forward.1} parent=1 // pred_region
      %61 = dma.done [#allocation4], 128
    $region33: #{value_network_forward.1} parent=1 // pred_fallthru
      _
    // Predicated region
    $region34: #{value_network_forward.1} parent=1 // pred_check
      _
    $region35: #{value_network_forward.1} parent=1 // pred_check_branch
      %63 = sbr.rel (0) target = $region37
    $region36: #{value_network_forward.1} parent=1 // pred_region
      %64 = dma.done [#allocation7], 256
    $region37: #{value_network_forward.1} parent=1 // pred_fallthru
      _
    // Predicated region
    $region38: #{value_network_forward.1} parent=1 // pred_check
      _
    $region39: #{value_network_forward.1} parent=1 // pred_check_branch
      %66 = sbr.rel (0) target = $region41
    $region40: #{value_network_forward.1} parent=1 // pred_region
      %67 = dma.done [#allocation7], 4096
    $region41: #{value_network_forward.1} parent=1 // pred_fallthru
      _
    %v69 = vld [vmem:[%s2] sm:$0x3]
    %v70 = vld [vmem:[%s4] sm:$0x3]
    %v71 = vld [vmem:[%s5] sm:$0x3]
    %v72 = vld [vmem:[#allocation2] sm:$0x1]
    %v73 = vld [vmem:[#allocation3] sm:$0xff]
    %v74 = vpack.c.bf16 %v73, %v73
    %v75 = vld [vmem:[#allocation6] sm:$0xff]
    %v76 = vld [vmem:[#allocation6 + $0x8] sm:$0xff]
    %v78 = vlaneseq
    %v79 = vshrl.u32 %v78, 7
    %v80 = vsub.s32 0, %v79
    %v81 = vrot.slane %v69, %v80
    %v82 = vlaneseq
    %v83 = vshrl.u32 %v82, 7
    %v84 = vsub.s32 1, %v83
    %v85 = vrot.slane %v69, %v84
    %v90 = vunpack.c.l.b16 %v75
    %v91 = vunpack.c.h.b16 %v75
    %v92 = vunpack.c.l.b16 %v76
    %v93 = vunpack.c.h.b16 %v76
    %v94 = vpack.c.b16 %v92, %v90
    %v95 = vpack.c.b16 %v93, %v91
    %vm98 = vcmask 130048
    %v100 = vsel %vm98, %v74, 0
    %102 = vmatprep.subr.bf16.mxu0 0
    %103 = vmatpush1.bf16.msra.mxu0 0
    %104 = vmatprep.subr.bf16.mxu0 0
    %105 = vmatpush1.bf16.msra.mxu0 0
    %106 = vmatprep.subr.bf16.mxu0 0
    %107 = vmatpush1.bf16.msra.mxu0 0
    %108 = vmatprep.subr.bf16.mxu0 0
    %109 = vmatpush1.bf16.msra.mxu0 0
    %110 = vmatprep.subr.bf16.mxu0 0
    %111 = vmatpush1.bf16.msra.mxu0 0
    %112 = vmatprep.subr.bf16.mxu0 0
    %113 = vmatpush1.bf16.msra.mxu0 0
    %114 = vmatprep.subr.bf16.mxu0 0
    %115 = vmatpush1.bf16.msra.mxu0 0
    %116 = vmatprep.subr.bf16.mxu0 %v95
    %117 = vmatpush1.bf16.msra.mxu0 %v94
    %118 = vmatprep.subr.bf16.mxu0 0
    %119 = vmatpush2.bf16.msra.mxu0 0
    %120 = vmatprep.subr.bf16.mxu0 0
    %121 = vmatpush2.bf16.msra.mxu0 0
    %122 = vmatprep.subr.bf16.mxu0 0
    %123 = vmatpush2.bf16.msra.mxu0 0
    %124 = vmatprep.subr.bf16.mxu0 0
    %125 = vmatpush2.bf16.msra.mxu0 0
    %126 = vmatprep.subr.bf16.mxu0 0
    %127 = vmatpush2.bf16.msra.mxu0 0
    %128 = vmatprep.subr.bf16.mxu0 0
    %129 = vmatpush2.bf16.msra.mxu0 0
    %130 = vmatprep.subr.bf16.mxu0 0
    %131 = vmatpush2.bf16.msra.mxu0 0
    %132 = vmatprep.subr.bf16.mxu0 0
    %133 = vmatpush2.bf16.msra.mxu0 0
    %134 = vmatprep.mubr.bf16.mxu0 0
    %135 = vmatmul.mubr.bf16.gmra.mxu0 %v100
    %v136 = vpop.f32.mrf.mxu0
    %v137 = vadd.f32 %v81, %v136
    %v138 = vpop.f32.mrf.mxu0
    %v139 = vadd.f32 %v85, %v138
    %v140 = vpop.f32.mrf.mxu0
    %v141 = vpop.f32.mrf.mxu0
    %142 = vdwg.mxu0
    %v143 = vmax.f32 %v137, 0.0
    %v144 = vmax.f32 %v139, 0.0
    %v145 = vpack.c.bf16 %v143, %v143
    %v146 = vpack.c.bf16 %v144, %v144
    %v147 = vld [vmem:[#allocation8] sm:$0xff]
    %v148 = vld [vmem:[#allocation8 + $0x8] sm:$0xff]
    %v149 = vld [vmem:[#allocation8 + $0x10] sm:$0xff]
    %v150 = vld [vmem:[#allocation8 + $0x18] sm:$0xff]
    %v151 = vld [vmem:[#allocation8 + $0x20] sm:$0xff]
    %v152 = vld [vmem:[#allocation8 + $0x28] sm:$0xff]
    %v153 = vld [vmem:[#allocation8 + $0x30] sm:$0xff]
    %v154 = vld [vmem:[#allocation8 + $0x38] sm:$0xff]
    %v155 = vld [vmem:[#allocation8 + $0x40] sm:$0xff]
    %v156 = vld [vmem:[#allocation8 + $0x48] sm:$0xff]
    %v157 = vld [vmem:[#allocation8 + $0x50] sm:$0xff]
    %v158 = vld [vmem:[#allocation8 + $0x58] sm:$0xff]
    %v159 = vld [vmem:[#allocation8 + $0x60] sm:$0xff]
    %v160 = vld [vmem:[#allocation8 + $0x68] sm:$0xff]
    %v161 = vld [vmem:[#allocation8 + $0x70] sm:$0xff]
    %v162 = vld [vmem:[#allocation8 + $0x78] sm:$0xff]
    %v163 = vld [vmem:[#allocation8 + $0x80] sm:$0xff]
    %v164 = vld [vmem:[#allocation8 + $0x88] sm:$0xff]
    %v165 = vld [vmem:[#allocation8 + $0x90] sm:$0xff]
    %v166 = vld [vmem:[#allocation8 + $0x98] sm:$0xff]
    %v167 = vld [vmem:[#allocation8 + $0xa0] sm:$0xff]
    %v168 = vld [vmem:[#allocation8 + $0xa8] sm:$0xff]
    %v169 = vld [vmem:[#allocation8 + $0xb0] sm:$0xff]
    %v170 = vld [vmem:[#allocation8 + $0xb8] sm:$0xff]
    %v171 = vld [vmem:[#allocation8 + $0xc0] sm:$0xff]
    %v172 = vld [vmem:[#allocation8 + $0xc8] sm:$0xff]
    %v173 = vld [vmem:[#allocation8 + $0xd0] sm:$0xff]
    %v174 = vld [vmem:[#allocation8 + $0xd8] sm:$0xff]
    %v175 = vld [vmem:[#allocation8 + $0xe0] sm:$0xff]
    %v176 = vld [vmem:[#allocation8 + $0xe8] sm:$0xff]
    %v177 = vld [vmem:[#allocation8 + $0xf0] sm:$0xff]
    %v178 = vld [vmem:[#allocation8 + $0xf8] sm:$0xff]
    %v180 = vlaneseq
    %v181 = vshrl.u32 %v180, 7
    %v182 = vsub.s32 0, %v181
    %v183 = vrot.slane %v70, %v182
    %v184 = vlaneseq
    %v185 = vshrl.u32 %v184, 7
    %v186 = vsub.s32 1, %v185
    %v187 = vrot.slane %v70, %v186
    %v222 = vunpack.c.l.b16 %v147
    %v223 = vunpack.c.h.b16 %v147
    %v224 = vunpack.c.l.b16 %v148
    %v225 = vunpack.c.h.b16 %v148
    %v226 = vunpack.c.l.b16 %v149
    %v227 = vunpack.c.h.b16 %v149
    %v228 = vunpack.c.l.b16 %v150
    %v229 = vunpack.c.h.b16 %v150
    %v230 = vunpack.c.l.b16 %v151
    %v231 = vunpack.c.h.b16 %v151
    %v232 = vunpack.c.l.b16 %v152
    %v233 = vunpack.c.h.b16 %v152
    %v234 = vunpack.c.l.b16 %v153
    %v235 = vunpack.c.h.b16 %v153
    %v236 = vunpack.c.l.b16 %v154
    %v237 = vunpack.c.h.b16 %v154
    %v238 = vunpack.c.l.b16 %v155
    %v239 = vunpack.c.h.b16 %v155
    %v240 = vunpack.c.l.b16 %v156
    %v241 = vunpack.c.h.b16 %v156
    %v242 = vunpack.c.l.b16 %v157
    %v243 = vunpack.c.h.b16 %v157
    %v244 = vunpack.c.l.b16 %v158
    %v245 = vunpack.c.h.b16 %v158
    %v246 = vunpack.c.l.b16 %v159
    %v247 = vunpack.c.h.b16 %v159
    %v248 = vunpack.c.l.b16 %v160
    %v249 = vunpack.c.h.b16 %v160
    %v250 = vunpack.c.l.b16 %v161
    %v251 = vunpack.c.h.b16 %v161
    %v252 = vunpack.c.l.b16 %v162
    %v253 = vunpack.c.h.b16 %v162
    %v254 = vunpack.c.l.b16 %v163
    %v255 = vunpack.c.h.b16 %v163
    %v256 = vunpack.c.l.b16 %v164
    %v257 = vunpack.c.h.b16 %v164
    %v258 = vunpack.c.l.b16 %v165
    %v259 = vunpack.c.h.b16 %v165
    %v260 = vunpack.c.l.b16 %v166
    %v261 = vunpack.c.h.b16 %v166
    %v262 = vunpack.c.l.b16 %v167
    %v263 = vunpack.c.h.b16 %v167
    %v264 = vunpack.c.l.b16 %v168
    %v265 = vunpack.c.h.b16 %v168
    %v266 = vunpack.c.l.b16 %v169
    %v267 = vunpack.c.h.b16 %v169
    %v268 = vunpack.c.l.b16 %v170
    %v269 = vunpack.c.h.b16 %v170
    %v270 = vunpack.c.l.b16 %v171
    %v271 = vunpack.c.h.b16 %v171
    %v272 = vunpack.c.l.b16 %v172
    %v273 = vunpack.c.h.b16 %v172
    %v274 = vunpack.c.l.b16 %v173
    %v275 = vunpack.c.h.b16 %v173
    %v276 = vunpack.c.l.b16 %v174
    %v277 = vunpack.c.h.b16 %v174
    %v278 = vunpack.c.l.b16 %v175
    %v279 = vunpack.c.h.b16 %v175
    %v280 = vunpack.c.l.b16 %v176
    %v281 = vunpack.c.h.b16 %v176
    %v282 = vunpack.c.l.b16 %v177
    %v283 = vunpack.c.h.b16 %v177
    %v284 = vunpack.c.l.b16 %v178
    %v285 = vunpack.c.h.b16 %v178
    %v286 = vpack.c.b16 %v224, %v222
    %v287 = vpack.c.b16 %v225, %v223
    %v288 = vpack.c.b16 %v228, %v226
    %v289 = vpack.c.b16 %v229, %v227
    %v290 = vpack.c.b16 %v232, %v230
    %v291 = vpack.c.b16 %v233, %v231
    %v292 = vpack.c.b16 %v236, %v234
    %v293 = vpack.c.b16 %v237, %v235
    %v294 = vpack.c.b16 %v240, %v238
    %v295 = vpack.c.b16 %v241, %v239
    %v296 = vpack.c.b16 %v244, %v242
    %v297 = vpack.c.b16 %v245, %v243
    %v298 = vpack.c.b16 %v248, %v246
    %v299 = vpack.c.b16 %v249, %v247
    %v300 = vpack.c.b16 %v252, %v250
    %v301 = vpack.c.b16 %v253, %v251
    %v302 = vpack.c.b16 %v256, %v254
    %v303 = vpack.c.b16 %v257, %v255
    %v304 = vpack.c.b16 %v260, %v258
    %v305 = vpack.c.b16 %v261, %v259
    %v306 = vpack.c.b16 %v264, %v262
    %v307 = vpack.c.b16 %v265, %v263
    %v308 = vpack.c.b16 %v268, %v266
    %v309 = vpack.c.b16 %v269, %v267
    %v310 = vpack.c.b16 %v272, %v270
    %v311 = vpack.c.b16 %v273, %v271
    %v312 = vpack.c.b16 %v276, %v274
    %v313 = vpack.c.b16 %v277, %v275
    %v314 = vpack.c.b16 %v280, %v278
    %v315 = vpack.c.b16 %v281, %v279
    %v316 = vpack.c.b16 %v284, %v282
    %v317 = vpack.c.b16 %v285, %v283
    %350 = vmatprep.subr.bf16.mxu0 %v301
    %351 = vmatpush1.bf16.msra.mxu0 %v300
    %352 = vmatprep.subr.bf16.mxu0 %v299
    %353 = vmatpush1.bf16.msra.mxu0 %v298
    %354 = vmatprep.subr.bf16.mxu0 %v297
    %355 = vmatpush1.bf16.msra.mxu0 %v296
    %356 = vmatprep.subr.bf16.mxu0 %v295
    %357 = vmatpush1.bf16.msra.mxu0 %v294
    %358 = vmatprep.subr.bf16.mxu0 %v293
    %359 = vmatpush1.bf16.msra.mxu0 %v292
    %360 = vmatprep.subr.bf16.mxu0 %v291
    %361 = vmatpush1.bf16.msra.mxu0 %v290
    %362 = vmatprep.subr.bf16.mxu0 %v289
    %363 = vmatpush1.bf16.msra.mxu0 %v288
    %364 = vmatprep.subr.bf16.mxu0 %v287
    %365 = vmatpush1.bf16.msra.mxu0 %v286
    %366 = vmatprep.subr.bf16.mxu0 %v317
    %367 = vmatpush2.bf16.msra.mxu0 %v316
    %368 = vmatprep.subr.bf16.mxu0 %v315
    %369 = vmatpush2.bf16.msra.mxu0 %v314
    %370 = vmatprep.subr.bf16.mxu0 %v313
    %371 = vmatpush2.bf16.msra.mxu0 %v312
    %372 = vmatprep.subr.bf16.mxu0 %v311
    %373 = vmatpush2.bf16.msra.mxu0 %v310
    %374 = vmatprep.subr.bf16.mxu0 %v309
    %375 = vmatpush2.bf16.msra.mxu0 %v308
    %376 = vmatprep.subr.bf16.mxu0 %v307
    %377 = vmatpush2.bf16.msra.mxu0 %v306
    %378 = vmatprep.subr.bf16.mxu0 %v305
    %379 = vmatpush2.bf16.msra.mxu0 %v304
    %380 = vmatprep.subr.bf16.mxu0 %v303
    %381 = vmatpush2.bf16.msra.mxu0 %v302
    %382 = vmatprep.mubr.bf16.mxu0 %v146
    %383 = vmatmul.mubr.bf16.gmra.mxu0 %v145
    %v384 = vpop.f32.mrf.mxu0
    %v385 = vadd.f32 %v183, %v384
    %v386 = vpop.f32.mrf.mxu0
    %v387 = vadd.f32 %v187, %v386
    %v388 = vpop.f32.mrf.mxu0
    %v389 = vpop.f32.mrf.mxu0
    %390 = vdwg.mxu0
    %v391 = vmax.f32 %v385, 0.0
    %v392 = vmax.f32 %v387, 0.0
    %394 = vset.pattern.permute.xlu0 0
    %395 = vperm.xlu0 %394, %v72
    %v396 = vpop.permute.xlu0 %395
    %v398 = vlaneseq
    %v399 = vshrl.u32 %v398, 7
    %v400 = vsub.s32 0, %v399
    %v401 = vrot.slane %v396, %v400
    %v403 = vlaneseq
    %v404 = vshrl.u32 %v403, 7
    %v405 = vsub.s32 0, %v404
    %v406 = vrot.slane %v71, %v405
    %v407 = vlaneseq
    %v408 = vshrl.u32 %v407, 7
    %v409 = vsub.s32 1, %v408
    %v410 = vrot.slane %v71, %v409
    %413 = vmatprep.subr.mxu0 0.0
    %414 = vmatpush1.xpose.msra.mxu0 0.0
    %415 = vmatprep.subr.mxu0 0.0
    %416 = vmatpush1.xpose.msra.mxu0 0.0
    %417 = vmatprep.subr.mxu0 0.0
    %418 = vmatpush1.xpose.msra.mxu0 0.0
    %419 = vmatprep.subr.mxu0 0.0
    %420 = vmatpush1.xpose.msra.mxu0 0.0
    %421 = vmatprep.subr.mxu0 0.0
    %422 = vmatpush1.xpose.msra.mxu0 0.0
    %423 = vmatprep.subr.mxu0 0.0
    %424 = vmatpush1.xpose.msra.mxu0 0.0
    %425 = vmatprep.subr.mxu0 0.0
    %426 = vmatpush1.xpose.msra.mxu0 0.0
    %427 = vmatprep.subr.mxu0 0.0
    %428 = vmatpush1.xpose.msra.mxu0 0.0
    %429 = vmatprep.subr.mxu0 0.0
    %430 = vmatpush1.xpose.msra.mxu0 0.0
    %431 = vmatprep.subr.mxu0 0.0
    %432 = vmatpush1.xpose.msra.mxu0 0.0
    %433 = vmatprep.subr.mxu0 0.0
    %434 = vmatpush1.xpose.msra.mxu0 0.0
    %435 = vmatprep.subr.mxu0 0.0
    %436 = vmatpush1.xpose.msra.mxu0 0.0
    %437 = vmatprep.subr.mxu0 0.0
    %438 = vmatpush1.xpose.msra.mxu0 0.0
    %439 = vmatprep.subr.mxu0 0.0
    %440 = vmatpush1.xpose.msra.mxu0 0.0
    %441 = vmatprep.subr.mxu0 0.0
    %442 = vmatpush1.xpose.msra.mxu0 0.0
    %443 = vmatprep.subr.mxu0 %v392
    %444 = vmatpush1.xpose.msra.mxu0 %v391
    %445 = vmatprep.subr.mxu0 0.0
    %446 = vmatpush2.xpose.msra.mxu0 0.0
    %447 = vmatprep.subr.mxu0 0.0
    %448 = vmatpush2.xpose.msra.mxu0 0.0
    %449 = vmatprep.subr.mxu0 0.0
    %450 = vmatpush2.xpose.msra.mxu0 0.0
    %451 = vmatprep.subr.mxu0 0.0
    %452 = vmatpush2.xpose.msra.mxu0 0.0
    %453 = vmatprep.subr.mxu0 0.0
    %454 = vmatpush2.xpose.msra.mxu0 0.0
    %455 = vmatprep.subr.mxu0 0.0
    %456 = vmatpush2.xpose.msra.mxu0 0.0
    %457 = vmatprep.subr.mxu0 0.0
    %458 = vmatpush2.xpose.msra.mxu0 0.0
    %459 = vmatprep.subr.mxu0 0.0
    %460 = vmatpush2.xpose.msra.mxu0 0.0
    %461 = vmatprep.subr.mxu0 0.0
    %462 = vmatpush2.xpose.msra.mxu0 0.0
    %463 = vmatprep.subr.mxu0 0.0
    %464 = vmatpush2.xpose.msra.mxu0 0.0
    %465 = vmatprep.subr.mxu0 0.0
    %466 = vmatpush2.xpose.msra.mxu0 0.0
    %467 = vmatprep.subr.mxu0 0.0
    %468 = vmatpush2.xpose.msra.mxu0 0.0
    %469 = vmatprep.subr.mxu0 0.0
    %470 = vmatpush2.xpose.msra.mxu0 0.0
    %471 = vmatprep.subr.mxu0 0.0
    %472 = vmatpush2.xpose.msra.mxu0 0.0
    %473 = vmatprep.subr.mxu0 0.0
    %474 = vmatpush2.xpose.msra.mxu0 0.0
    %475 = vmatprep.subr.mxu0 0.0
    %476 = vmatpush2.xpose.msra.mxu0 0.0
    %477 = vmatprep.mubr.f32.mxu0 %v410
    %478 = vmatmul.mubr.f32.gmra.mxu0 %v406
    %v479 = vpop.f32.mrf.mxu0
    %v480 = vadd.f32 %v401, %v479
    %v481 = vpop.f32.mrf.mxu0
    %482 = vdwg.mxu0
    %vm483 = vcmask 57344
    %484 = vst.msk [vmem:[#allocation9] sm:$0x1] %vm483, %v480
    // Predicated region
    $region42: #{value_network_forward.1} parent=1 // pred_check
      _
    $region43: #{value_network_forward.1} parent=1 // pred_check_branch
      %486 = sbr.rel (0) target = $region45
    $region44: #{value_network_forward.1} parent=1 // pred_region
      %s488 = ssub.s32 16, 16
      %489 = vsyncadd [#allocation5], %s488
      %s491 = sshll.u32 [#allocation9], 4
      %s492 = int_to_ptr.vmem [resolvable:$true] %s491
      %494 = dma.vmem_to_hbm [thread:$0]  %s492, 16, %s7, [#allocation5]
    $region45: #{value_network_forward.1} parent=1 // pred_fallthru
      _
    // Predicated region
    $region46: #{value_network_forward.1} parent=1 // pred_check
      _
    $region47: #{value_network_forward.1} parent=1 // pred_check_branch
      %496 = sbr.rel (0) target = $region49
    $region48: #{value_network_forward.1} parent=1 // pred_region
      %497 = dma.done [#allocation5], 16
    $region49: #{value_network_forward.1} parent=1 // pred_fallthru
      _
    %498 = vsyncpa [#allocation4], 1
    %499 = vsyncpa [#allocation7], 1
    %500 = vsyncpa [#allocation5], 1

</llo_original>
